<compile_context>
chip_gen: v6e
topology: v6e:2x2x1
jax: 0.10.0
libtpu: 0.0.40
codegen_flags: <defaults>
</compile_context>

<pallas_src>
import jax
import jax.numpy as jnp
from jax.experimental import pallas as pl
from jax.experimental.pallas import tpu as pltpu


def graph_tensor_kernel(market_ref, adjs_ref, wide_ref, slab32_ref, out_ref):
    n_adj, n, h = out_ref.shape
    dm = market_ref.shape[1]                  # d_market
    ph = wide_ref.shape[1] // n_adj           # d_piece * d_hidden

    market = market_ref[...]                  # (n, dm)
    adjs_flat = adjs_ref[...]                 # (n_adj*n, n): raw adjacencies stacked

    # ---- static slices of the packed weight slabs (prepared once at init) ----
    eff = wide_ref[0:h, :]                    # (h, n_adj*ph): relR*relu(map_k), lane-concat over k
    wc2rep = wide_ref[h:h + dm, 0:ph]         # (dm, ph): tile(wc2, P)
    o = 0
    wc1 = slab32_ref[o:o + dm, :]; o += dm    # (dm, h)
    w1p = slab32_ref[o:o + h, :]; o += h      # (h, h)   [W1 | 0]
    wc2w2p = slab32_ref[o:o + dm, :]; o += dm # (dm, h)  wc2 @ [0 | W2]   (fused at init)
    w3rep = slab32_ref[o:o + ph, :]; o += ph  # (ph, h)  W3 row-repeated
    b1 = slab32_ref[o:o + n, :]               # (n, h)

    # ---- cumulative adjacency masks: pure VPU on (n, n) tiles, stacked on sublanes ----
    acums = [adjs_flat[0:n, :]]
    for k in range(1, n_adj):
        acums.append(acums[-1] * adjs_flat[k * n:(k + 1) * n, :])
    acum_stack = jnp.concatenate(acums, axis=0)                                 # (n_adj*n, n)

    # ---- projections (Conv1d(kernel_size=1, bias=False) == matmul) ----
    news = jnp.dot(market, wc1, preferred_element_type=jnp.float32)             # (n, h)
    mkt_rep = jnp.dot(market, wc2rep, preferred_element_type=jnp.float32)       # (n, ph) = tile(mkt, P)
    mw2 = jnp.dot(market, wc2w2p, preferred_element_type=jnp.float32)           # (n, h), right half live

    # ---- all n_adj adjacency steps batched: no loop-carried MXU dependency ----
    # y_rep[k*n+i, p*h+h'] = sum_j acum_k[i,j] * mkt[j,h']   (replicated over p)
    y_rep = jnp.dot(acum_stack, mkt_rep, preferred_element_type=jnp.float32)    # (n_adj*n, ph)
    # temp_all[i, k*ph + p*h + h'] = sum_h news[i,h] * (relR*relu(map_k))[p,h,h']
    temp_all = jnp.dot(news, eff, preferred_element_type=jnp.float32)           # (n, n_adj*ph)
    # restack per-k lane blocks (whole-vreg slices) onto sublanes to match y_rep rows
    temp_stack = jnp.concatenate(
        [temp_all[:, k * ph:(k + 1) * ph] for k in range(n_adj)], axis=0)       # (n_adj*n, ph)
    z = y_rep * temp_stack                                                      # (n_adj*n, ph)
    ft_all = jnp.dot(z, w3rep, preferred_element_type=jnp.float32)              # (n_adj*n, h)

    # final_linear: left half = news@W1, right half = adj@(mkt@W2); disjoint lanes, no concat
    fl1 = jnp.dot(news, w1p, preferred_element_type=jnp.float32)                # (n, h)
    fl2_all = jnp.dot(adjs_flat, mw2, preferred_element_type=jnp.float32)       # (n_adj*n, h)

    for k in range(n_adj):                     # static unroll; sublane-aligned slices + stores
        sl = slice(k * n, (k + 1) * n)
        out_ref[k] = jnp.maximum(ft_all[sl, :] + fl2_all[sl, :] + fl1 + b1, 0.0)


def prepare_params(wc1, wc2, relR, mappings, w1, w2, w3, b1):
    """Weight-only preprocessing. Run ONCE at model init (hoisted off the call path)."""
    hp = jax.lax.Precision.HIGHEST
    p, h, _ = relR.shape
    n_adj = mappings.shape[0]
    dm = wc1.shape[0]
    n = b1.shape[0]
    hh = w1.shape[1]
    assert h == 2 * hh, "d_hidden must be even for the concat-free final_linear padding"

    # eff_k = relR * relu(mapping_k) (relu-before-multiply, matching the reference),
    # laid out lane-dense as (h, p*h) and lane-concatenated across k.
    eff = relR[None] * jax.nn.relu(mappings)                                    # (n_adj, p, h, h)
    eff_slab = jnp.transpose(eff, (2, 0, 1, 3)).reshape(h, n_adj * p * h)       # (h, n_adj*p*h)

    # tile(wc2, P) so market @ wc2rep == tile(market@wc2, P) -> y replication folded into weights
    wc2rep = jnp.tile(wc2, (1, p))                                              # (dm, p*h)
    wc2rep_pad = jnp.concatenate(
        [wc2rep, jnp.zeros((dm, (n_adj - 1) * p * h), wc2.dtype)], axis=1)
    wide_slab = jnp.concatenate([eff_slab, wc2rep_pad], axis=0)                 # (h+dm, n_adj*p*h)

    # W1/W2 zero-padded to (h, h) so the two final_linear halves land in disjoint lanes.
    w1p = jnp.concatenate([w1, jnp.zeros((h, h - hh), w1.dtype)], axis=1)       # [W1 | 0]
    w2p = jnp.concatenate([jnp.zeros((h, hh), w2.dtype), w2], axis=1)           # [0 | W2]
    wc2w2p = jnp.dot(wc2, w2p, precision=hp)                                    # fuse mkt@W2 weights
    w3rep = jnp.repeat(w3, h, axis=0)                                           # (p*h, h)

    slab32 = jnp.concatenate([wc1, w1p, wc2w2p, w3rep, b1], axis=0)             # (2*dm+h+p*h+n, h)
    return {"wide": wide_slab, "slab32": slab32}


def graph_tensor_forward(market, adjs, params):
    wide_slab, slab32 = params["wide"], params["slab32"]
    n_adj, n, _ = adjs.shape
    h = slab32.shape[1]
    dm = market.shape[1]
    ph = wide_slab.shape[1] // n_adj
    adjs_flat = adjs.reshape(n_adj * n, n)    # contiguous reshape: free (metadata only)

    flops = 2 * (n * dm * h            # news
                 + n * dm * ph         # mkt_rep
                 + n * dm * h          # mw2
                 + n_adj * n * n * ph  # y_rep
                 + n * h * n_adj * ph  # temp_all
                 + n_adj * n * ph * h  # ft_all
                 + n * h * h           # fl1
                 + n_adj * n * n * h)  # fl2_all
    bytes_accessed = 4 * (market.size + adjs_flat.size + wide_slab.size
                          + slab32.size + n_adj * n * h)

    vmem = pl.BlockSpec(memory_space=pltpu.MemorySpace.VMEM)
    return pl.pallas_call(
        graph_tensor_kernel,
        out_shape=jax.ShapeDtypeStruct((n_adj, n, h), jnp.float32),
        in_specs=[vmem] * 4,
        out_specs=vmem,
        cost_estimate=pl.CostEstimate(flops=flops, transcendentals=0,
                                      bytes_accessed=bytes_accessed),
    )(market, adjs_flat, wide_slab, slab32)


def reference(market, adjs, wc1, wc2, relR, mappings, w1, w2, w3, b1):
    """Pure-JAX transliteration of the PyTorch forward (for verification)."""
    hp = jax.lax.Precision.HIGHEST
    news = jnp.dot(market, wc1, precision=hp)
    mkt = jnp.dot(market, wc2, precision=hp)
    n = market.shape[0]
    acum = jnp.ones((n, n), jnp.float32)
    outs = []
    for k in range(adjs.shape[0]):
        adj = adjs[k]
        acum = acum * adj
        eff_r = relR * jax.nn.relu(mappings[k])                      # (P, H, H)
        temp = jnp.einsum('nh,phk->npk', news, eff_r, precision=hp)  # (N, P, H)
        y = jnp.dot(acum, mkt, precision=hp)                         # (N, H)
        ft = jnp.einsum('nh,nph->np', y, temp, precision=hp)         # (N, P)
        ft = jnp.dot(ft, w3, precision=hp)                           # (N, H)
        fl1 = jnp.dot(news, w1, precision=hp)
        fl2 = jnp.dot(adj, jnp.dot(mkt, w2, precision=hp), precision=hp)
        fl = jnp.concatenate([fl1, fl2], axis=-1)
        outs.append(jax.nn.relu(ft + fl + b1))
    return jnp.stack(outs)


if __name__ == "__main__":
    num_stock, d_hidden, d_market, d_piece = 8, 32, 16, 4
    n_adj = 3   # adj_num has keys "1", "2", "3"

    key = jax.random.PRNGKey(0)
    ks = jax.random.split(key, 10)
    market = jax.random.normal(ks[0], (num_stock, d_market), jnp.float32)
    adjs = (jax.random.uniform(ks[1], (n_adj, num_stock, num_stock)) > 0.5
            ).astype(jnp.float32)

    # Deterministic synthetic parameters (shapes from __init__; no checkpoint load).
    wc1 = jax.random.normal(ks[2], (d_market, d_hidden), jnp.float32) * 0.1
    wc2 = jax.random.normal(ks[3], (d_market, d_hidden), jnp.float32) * 0.1
    relR = jax.random.normal(ks[4], (d_piece, d_hidden, d_hidden), jnp.float32) * 0.1
    mappings = jax.random.normal(ks[5], (n_adj, d_piece, d_hidden, d_hidden),
                                 jnp.float32) * 0.1
    w1 = jax.random.normal(ks[6], (d_hidden, d_hidden // 2), jnp.float32) * 0.1
    w2 = jax.random.normal(ks[7], (d_hidden, d_hidden // 2), jnp.float32) * 0.1
    w3 = jax.random.normal(ks[8], (d_piece, d_hidden), jnp.float32) * 0.1
    b1 = jax.random.normal(ks[9], (num_stock, d_hidden), jnp.float32) * 0.1

    # One-time init (weight packing) -- NOT part of the per-call path.
    params = jax.block_until_ready(
        prepare_params(wc1, wc2, relR, mappings, w1, w2, w3, b1))

    out = graph_tensor_forward(market, adjs, params)
    out = jax.block_until_ready(out)

    ref = reference(market, adjs, wc1, wc2, relR, mappings, w1, w2, w3, b1)
    assert out.shape == (n_adj, num_stock, d_hidden)
    assert jnp.allclose(out, ref, atol=2e-3, rtol=2e-3), (
        f"max abs diff {jnp.max(jnp.abs(out - ref))}")
    print("KERNEL_OK")
</pallas_src>

<mosaic_0001>
module attributes {stable_mosaic.version = 11 : i64} {
  func.func @graph_tensor_kernel(%arg0: memref<8x16xf32, #tpu.memory_space<vmem>>, %arg1: memref<24x8xf32, #tpu.memory_space<vmem>>, %arg2: memref<48x384xf32, #tpu.memory_space<vmem>>, %arg3: memref<200x32xf32, #tpu.memory_space<vmem>>, %arg4: memref<3x8x32xf32, #tpu.memory_space<vmem>>) attributes {dimension_semantics = [], scalar_prefetch = 0 : i64, scratch_operands = 0 : i64, tpu.core_type = #tpu.core_type<tc>} {
    %c0 = arith.constant 0 : index
    %c0_0 = arith.constant 0 : index
    %0 = vector.load %arg0[%c0, %c0_0] : memref<8x16xf32, #tpu.memory_space<vmem>>, vector<8x16xf32>
    %c0_1 = arith.constant 0 : index
    %c0_2 = arith.constant 0 : index
    %1 = vector.load %arg1[%c0_1, %c0_2] : memref<24x8xf32, #tpu.memory_space<vmem>>, vector<24x8xf32>
    %c0_3 = arith.constant 0 : index
    %c0_4 = arith.constant 0 : index
    %2 = vector.load %arg2[%c0_3, %c0_4] : memref<48x384xf32, #tpu.memory_space<vmem>>, vector<32x384xf32>
    %c32 = arith.constant 32 : index
    %c0_5 = arith.constant 0 : index
    %3 = vector.load %arg2[%c32, %c0_5] : memref<48x384xf32, #tpu.memory_space<vmem>>, vector<16x128xf32>
    %c0_6 = arith.constant 0 : index
    %c0_7 = arith.constant 0 : index
    %4 = vector.load %arg3[%c0_6, %c0_7] : memref<200x32xf32, #tpu.memory_space<vmem>>, vector<16x32xf32>
    %c16 = arith.constant 16 : index
    %c0_8 = arith.constant 0 : index
    %5 = vector.load %arg3[%c16, %c0_8] : memref<200x32xf32, #tpu.memory_space<vmem>>, vector<32x32xf32>
    %c48 = arith.constant 48 : index
    %c0_9 = arith.constant 0 : index
    %6 = vector.load %arg3[%c48, %c0_9] : memref<200x32xf32, #tpu.memory_space<vmem>>, vector<16x32xf32>
    %c64 = arith.constant 64 : index
    %c0_10 = arith.constant 0 : index
    %7 = vector.load %arg3[%c64, %c0_10] : memref<200x32xf32, #tpu.memory_space<vmem>>, vector<128x32xf32>
    %c192 = arith.constant 192 : index
    %c0_11 = arith.constant 0 : index
    %8 = vector.load %arg3[%c192, %c0_11] : memref<200x32xf32, #tpu.memory_space<vmem>>, vector<8x32xf32>
    %9 = vector.extract_strided_slice %1 {offsets = [0, 0], sizes = [8, 8], strides = [1, 1]} : vector<24x8xf32> to vector<8x8xf32>
    %10 = vector.extract_strided_slice %1 {offsets = [8, 0], sizes = [8, 8], strides = [1, 1]} : vector<24x8xf32> to vector<8x8xf32>
    %11 = arith.mulf %9, %10 : vector<8x8xf32>
    %12 = vector.extract_strided_slice %1 {offsets = [16, 0], sizes = [8, 8], strides = [1, 1]} : vector<24x8xf32> to vector<8x8xf32>
    %13 = arith.mulf %11, %12 : vector<8x8xf32>
    %14 = tpu.concatenate %9, %11, %13 in 0 : vector<8x8xf32>, vector<8x8xf32>, vector<8x8xf32> -> vector<24x8xf32>
    %cst = arith.constant dense<0.000000e+00> : vector<8x32xf32>
    %15 = tpu.matmul %0, %4, %cst {dimension_numbers = #tpu.dot_dimension_numbers<[1], [0], [0], [1], [0, 0, 1, 1], [], []>} : vector<8x16xf32>, vector<16x32xf32>, vector<8x32xf32> -> vector<8x32xf32>
    %cst_12 = arith.constant dense<0.000000e+00> : vector<8x128xf32>
    %16 = tpu.matmul %0, %3, %cst_12 {dimension_numbers = #tpu.dot_dimension_numbers<[1], [0], [0], [1], [0, 0, 1, 1], [], []>} : vector<8x16xf32>, vector<16x128xf32>, vector<8x128xf32> -> vector<8x128xf32>
    %cst_13 = arith.constant dense<0.000000e+00> : vector<8x32xf32>
    %17 = tpu.matmul %0, %6, %cst_13 {dimension_numbers = #tpu.dot_dimension_numbers<[1], [0], [0], [1], [0, 0, 1, 1], [], []>} : vector<8x16xf32>, vector<16x32xf32>, vector<8x32xf32> -> vector<8x32xf32>
    %cst_14 = arith.constant dense<0.000000e+00> : vector<24x128xf32>
    %18 = tpu.matmul %14, %16, %cst_14 {dimension_numbers = #tpu.dot_dimension_numbers<[1], [0], [0], [1], [0, 0, 1, 1], [], []>} : vector<24x8xf32>, vector<8x128xf32>, vector<24x128xf32> -> vector<24x128xf32>
    %cst_15 = arith.constant dense<0.000000e+00> : vector<8x384xf32>
    %19 = tpu.matmul %15, %2, %cst_15 {dimension_numbers = #tpu.dot_dimension_numbers<[1], [0], [0], [1], [0, 0, 1, 1], [], []>} : vector<8x32xf32>, vector<32x384xf32>, vector<8x384xf32> -> vector<8x384xf32>
    %20 = vector.extract_strided_slice %19 {offsets = [0, 0], sizes = [8, 128], strides = [1, 1]} : vector<8x384xf32> to vector<8x128xf32>
    %21 = vector.extract_strided_slice %19 {offsets = [0, 128], sizes = [8, 128], strides = [1, 1]} : vector<8x384xf32> to vector<8x128xf32>
    %22 = vector.extract_strided_slice %19 {offsets = [0, 256], sizes = [8, 128], strides = [1, 1]} : vector<8x384xf32> to vector<8x128xf32>
    %23 = tpu.concatenate %20, %21, %22 in 0 : vector<8x128xf32>, vector<8x128xf32>, vector<8x128xf32> -> vector<24x128xf32>
    %24 = arith.mulf %18, %23 : vector<24x128xf32>
    %cst_16 = arith.constant dense<0.000000e+00> : vector<24x32xf32>
    %25 = tpu.matmul %24, %7, %cst_16 {dimension_numbers = #tpu.dot_dimension_numbers<[1], [0], [0], [1], [0, 0, 1, 1], [], []>} : vector<24x128xf32>, vector<128x32xf32>, vector<24x32xf32> -> vector<24x32xf32>
    %cst_17 = arith.constant dense<0.000000e+00> : vector<8x32xf32>
    %26 = tpu.matmul %15, %5, %cst_17 {dimension_numbers = #tpu.dot_dimension_numbers<[1], [0], [0], [1], [0, 0, 1, 1], [], []>} : vector<8x32xf32>, vector<32x32xf32>, vector<8x32xf32> -> vector<8x32xf32>
    %cst_18 = arith.constant dense<0.000000e+00> : vector<24x32xf32>
    %27 = tpu.matmul %1, %17, %cst_18 {dimension_numbers = #tpu.dot_dimension_numbers<[1], [0], [0], [1], [0, 0, 1, 1], [], []>} : vector<24x8xf32>, vector<8x32xf32>, vector<24x32xf32> -> vector<24x32xf32>
    %28 = vector.extract_strided_slice %25 {offsets = [0, 0], sizes = [8, 32], strides = [1, 1]} : vector<24x32xf32> to vector<8x32xf32>
    %29 = vector.extract_strided_slice %27 {offsets = [0, 0], sizes = [8, 32], strides = [1, 1]} : vector<24x32xf32> to vector<8x32xf32>
    %30 = arith.addf %28, %29 : vector<8x32xf32>
    %31 = arith.addf %30, %26 : vector<8x32xf32>
    %32 = arith.addf %31, %8 : vector<8x32xf32>
    %cst_19 = arith.constant 0.000000e+00 : f32
    %33 = vector.broadcast %cst_19 : f32 to vector<8x32xf32>
    %34 = arith.maximumf %32, %33 : vector<8x32xf32>
    %c0_20 = arith.constant 0 : index
    %c0_21 = arith.constant 0 : index
    %c0_22 = arith.constant 0 : index
    %35 = vector.load %arg4[%c0_20, %c0_21, %c0_22] : memref<3x8x32xf32, #tpu.memory_space<vmem>>, vector<1x8x32xf32>
    %36 = vector.shape_cast %35 : vector<1x8x32xf32> to vector<8x32xf32>
    %37 = vector.shape_cast %34 : vector<8x32xf32> to vector<1x8x32xf32>
    tpu.vector_store %arg4[%c0_20, %c0_21, %c0_22], %37 {strides = array<i32>} : memref<3x8x32xf32, #tpu.memory_space<vmem>>, vector<1x8x32xf32>,
    %38 = vector.extract_strided_slice %25 {offsets = [8, 0], sizes = [8, 32], strides = [1, 1]} : vector<24x32xf32> to vector<8x32xf32>
    %39 = vector.extract_strided_slice %27 {offsets = [8, 0], sizes = [8, 32], strides = [1, 1]} : vector<24x32xf32> to vector<8x32xf32>
    %40 = arith.addf %38, %39 : vector<8x32xf32>
    %41 = arith.addf %40, %26 : vector<8x32xf32>
    %42 = arith.addf %41, %8 : vector<8x32xf32>
    %cst_23 = arith.constant 0.000000e+00 : f32
    %43 = vector.broadcast %cst_23 : f32 to vector<8x32xf32>
    %44 = arith.maximumf %42, %43 : vector<8x32xf32>
    %c1 = arith.constant 1 : index
    %c0_24 = arith.constant 0 : index
    %c0_25 = arith.constant 0 : index
    %45 = vector.load %arg4[%c1, %c0_24, %c0_25] : memref<3x8x32xf32, #tpu.memory_space<vmem>>, vector<1x8x32xf32>
    %46 = vector.shape_cast %45 : vector<1x8x32xf32> to vector<8x32xf32>
    %47 = vector.shape_cast %44 : vector<8x32xf32> to vector<1x8x32xf32>
    tpu.vector_store %arg4[%c1, %c0_24, %c0_25], %47 {strides = array<i32>} : memref<3x8x32xf32, #tpu.memory_space<vmem>>, vector<1x8x32xf32>,
    %48 = vector.extract_strided_slice %25 {offsets = [16, 0], sizes = [8, 32], strides = [1, 1]} : vector<24x32xf32> to vector<8x32xf32>
    %49 = vector.extract_strided_slice %27 {offsets = [16, 0], sizes = [8, 32], strides = [1, 1]} : vector<24x32xf32> to vector<8x32xf32>
    %50 = arith.addf %48, %49 : vector<8x32xf32>
    %51 = arith.addf %50, %26 : vector<8x32xf32>
    %52 = arith.addf %51, %8 : vector<8x32xf32>
    %cst_26 = arith.constant 0.000000e+00 : f32
    %53 = vector.broadcast %cst_26 : f32 to vector<8x32xf32>
    %54 = arith.maximumf %52, %53 : vector<8x32xf32>
    %c2 = arith.constant 2 : index
    %c0_27 = arith.constant 0 : index
    %c0_28 = arith.constant 0 : index
    %55 = vector.load %arg4[%c2, %c0_27, %c0_28] : memref<3x8x32xf32, #tpu.memory_space<vmem>>, vector<1x8x32xf32>
    %56 = vector.shape_cast %55 : vector<1x8x32xf32> to vector<8x32xf32>
    %57 = vector.shape_cast %54 : vector<8x32xf32> to vector<1x8x32xf32>
    tpu.vector_store %arg4[%c2, %c0_27, %c0_28], %57 {strides = array<i32>} : memref<3x8x32xf32, #tpu.memory_space<vmem>>, vector<1x8x32xf32>,
    return
  }
}

</mosaic_0001>

<llo_original>
// kernel: tpu_custom_call.1
$region0: #{tpu_custom_call.1}
  #allocation0 [shape = 'u32[]', space=smem, size = 0x4, offset = 0x4, fixed_abs, tag = 'smem constant byte address 0x4 - core index']
  #allocation1 [shape = 'u32[144,128]{1,0:T(1,128)}', space=vmem, size = 0x12000, scoped, tag = 'internal scratch']
  %s0 = inlined_call_operand.vmem [shape: f32[8,16], index: 0, kind: input, shape index: {}]
  %s1 = inlined_call_operand.vmem [shape: f32[24,8], index: 1, kind: input, shape index: {}]
  %s2 = inlined_call_operand.vmem [shape: f32[48,384], index: 2, kind: input, shape index: {}]
  %s3 = inlined_call_operand.vmem [shape: f32[200,32], index: 3, kind: input, shape index: {}]
  %s4 = inlined_call_operand.hbm [shape: f32[3,8,32], index: 4, kind: output, shape index: {}]
  %s5 = sld [smem:[#allocation0]]
  $region26: #{tpu_custom_call.1} parent=0
    _
  %s7 = ssub.s32 1, %s5
  %s8 = scalar_select 0, %s7, %s5
  $region1: #{tpu_custom_call.1} parent=0
    #allocation2 [shape = 'u8[12288]{0}', space=vmem, size = 0x3000, scoped, tag = 'output window, operand 0, single buffered']
    #allocation3 [shape = 's32[1]{0}', space=sflag, size = 0x4, scoped, tag = 'scoped memory for tpu_custom_call.1']
    %9 = vsyncpa [#allocation3], 0
    // Predicated region
    $region2: #{tpu_custom_call.1} parent=1 // pred_check
      _
    $region3: #{tpu_custom_call.1} parent=1 // pred_check_branch
      %11 = sbr.rel (0) target = $region5
    $region4: #{tpu_custom_call.1} parent=1 // pred_region
      _
    $region5: #{tpu_custom_call.1} parent=1 // pred_fallthru
      _
    // Predicated region
    $region6: #{tpu_custom_call.1} parent=1 // pred_check
      _
    $region7: #{tpu_custom_call.1} parent=1 // pred_check_branch
      %13 = sbr.rel (0) target = $region9
    $region8: #{tpu_custom_call.1} parent=1 // pred_region
      _
    $region9: #{tpu_custom_call.1} parent=1 // pred_fallthru
      _
    // Predicated region
    $region10: #{tpu_custom_call.1} parent=1 // pred_check
      _
    $region11: #{tpu_custom_call.1} parent=1 // pred_check_branch
      %15 = sbr.rel (0) target = $region13
    $region12: #{tpu_custom_call.1} parent=1 // pred_region
      _
    $region13: #{tpu_custom_call.1} parent=1 // pred_fallthru
      _
    // Predicated region
    $region14: #{tpu_custom_call.1} parent=1 // pred_check
      _
    $region15: #{tpu_custom_call.1} parent=1 // pred_check_branch
      %17 = sbr.rel (0) target = $region17
    $region16: #{tpu_custom_call.1} parent=1 // pred_region
      _
    $region17: #{tpu_custom_call.1} parent=1 // pred_fallthru
      _
    %v18 = vld [vmem:[%s0] sm:$0xff]
    %v19 = vld [vmem:[%s1] sm:$0xff]
    %v20 = vld [vmem:[%s1 + $0x8] sm:$0xff]
    %v21 = vld [vmem:[%s1 + $0x10] sm:$0xff]
    %v22 = vld [vmem:[%s2] sm:$0xff]
    %v23 = vld [vmem:[%s2 + $0x8] sm:$0xff]
    %v24 = vld [vmem:[%s2 + $0x10] sm:$0xff]
    %v25 = vld [vmem:[%s2 + $0x18] sm:$0xff]
    %v26 = vld [vmem:[%s2 + $0x20] sm:$0xff]
    %v27 = vld [vmem:[%s2 + $0x28] sm:$0xff]
    %v28 = vld [vmem:[%s2 + $0x30] sm:$0xff]
    %v29 = vld [vmem:[%s2 + $0x38] sm:$0xff]
    %v30 = vld [vmem:[%s2 + $0x40] sm:$0xff]
    %v31 = vld [vmem:[%s2 + $0x48] sm:$0xff]
    %v32 = vld [vmem:[%s2 + $0x50] sm:$0xff]
    %v33 = vld [vmem:[%s2 + $0x58] sm:$0xff]
    %v34 = vld [vmem:[%s2 + $0x60] sm:$0xff]
    %v35 = vld [vmem:[%s2 + $0x78] sm:$0xff]
    %v36 = vld [vmem:[%s3] sm:$0xff]
    %v37 = vld [vmem:[%s3 + $0x8] sm:$0xff]
    %v38 = vld [vmem:[%s3 + $0x10] sm:$0xff]
    %v39 = vld [vmem:[%s3 + $0x18] sm:$0xff]
    %v40 = vld [vmem:[%s3 + $0x20] sm:$0xff]
    %v41 = vld [vmem:[%s3 + $0x28] sm:$0xff]
    %v42 = vld [vmem:[%s3 + $0x30] sm:$0xff]
    %v43 = vld [vmem:[%s3 + $0x38] sm:$0xff]
    %v44 = vld [vmem:[%s3 + $0x40] sm:$0xff]
    %v45 = vld [vmem:[%s3 + $0x48] sm:$0xff]
    %v46 = vld [vmem:[%s3 + $0x50] sm:$0xff]
    %v47 = vld [vmem:[%s3 + $0x58] sm:$0xff]
    %v48 = vld [vmem:[%s3 + $0x60] sm:$0xff]
    %v49 = vld [vmem:[%s3 + $0x68] sm:$0xff]
    %v50 = vld [vmem:[%s3 + $0x70] sm:$0xff]
    %v51 = vld [vmem:[%s3 + $0x78] sm:$0xff]
    %v52 = vld [vmem:[%s3 + $0x80] sm:$0xff]
    %v53 = vld [vmem:[%s3 + $0x88] sm:$0xff]
    %v54 = vld [vmem:[%s3 + $0x90] sm:$0xff]
    %v55 = vld [vmem:[%s3 + $0x98] sm:$0xff]
    %v56 = vld [vmem:[%s3 + $0xa0] sm:$0xff]
    %v57 = vld [vmem:[%s3 + $0xa8] sm:$0xff]
    %v58 = vld [vmem:[%s3 + $0xb0] sm:$0xff]
    %v59 = vld [vmem:[%s3 + $0xb8] sm:$0xff]
    %v60 = vld [vmem:[%s3 + $0xc0] sm:$0xff]
    %v61 = vmul.f32 %v19, %v20
    %v62 = vmul.f32 %v61, %v21
    %vm63 = vcmask 130048
    %v65 = vsel %vm63, %v18, 0
    %67 = vmatprep.subr.mxu0 0.0
    %68 = vmatpush1.msra.mxu0 0.0
    %69 = vmatprep.subr.mxu0 0.0
    %70 = vmatpush1.msra.mxu0 0.0
    %71 = vmatprep.subr.mxu0 0.0
    %72 = vmatpush1.msra.mxu0 0.0
    %73 = vmatprep.subr.mxu0 0.0
    %74 = vmatpush1.msra.mxu0 0.0
    %75 = vmatprep.subr.mxu0 0.0
    %76 = vmatpush1.msra.mxu0 0.0
    %77 = vmatprep.subr.mxu0 0.0
    %78 = vmatpush1.msra.mxu0 0.0
    %79 = vmatprep.subr.mxu0 0.0
    %80 = vmatpush1.msra.mxu0 0.0
    %81 = vmatprep.subr.mxu0 0.0
    %82 = vmatpush1.msra.mxu0 0.0
    %83 = vmatprep.subr.mxu0 0.0
    %84 = vmatpush1.msra.mxu0 0.0
    %85 = vmatprep.subr.mxu0 0.0
    %86 = vmatpush1.msra.mxu0 0.0
    %87 = vmatprep.subr.mxu0 0.0
    %88 = vmatpush1.msra.mxu0 0.0
    %89 = vmatprep.subr.mxu0 0.0
    %90 = vmatpush1.msra.mxu0 0.0
    %91 = vmatprep.subr.mxu0 0.0
    %92 = vmatpush1.msra.mxu0 0.0
    %93 = vmatprep.subr.mxu0 0.0
    %94 = vmatpush1.msra.mxu0 0.0
    %95 = vmatprep.subr.mxu0 0.0
    %96 = vmatpush1.msra.mxu0 %v37
    %97 = vmatprep.subr.mxu0 0.0
    %98 = vmatpush1.msra.mxu0 %v36
    %99 = vmatprep.subr.mxu0 0.0
    %100 = vmatpush2.msra.mxu0 0.0
    %101 = vmatprep.subr.mxu0 0.0
    %102 = vmatpush2.msra.mxu0 0.0
    %103 = vmatprep.subr.mxu0 0.0
    %104 = vmatpush2.msra.mxu0 0.0
    %105 = vmatprep.subr.mxu0 0.0
    %106 = vmatpush2.msra.mxu0 0.0
    %107 = vmatprep.subr.mxu0 0.0
    %108 = vmatpush2.msra.mxu0 0.0
    %109 = vmatprep.subr.mxu0 0.0
    %110 = vmatpush2.msra.mxu0 0.0
    %111 = vmatprep.subr.mxu0 0.0
    %112 = vmatpush2.msra.mxu0 0.0
    %113 = vmatprep.subr.mxu0 0.0
    %114 = vmatpush2.msra.mxu0 0.0
    %115 = vmatprep.subr.mxu0 0.0
    %116 = vmatpush2.msra.mxu0 0.0
    %117 = vmatprep.subr.mxu0 0.0
    %118 = vmatpush2.msra.mxu0 0.0
    %119 = vmatprep.subr.mxu0 0.0
    %120 = vmatpush2.msra.mxu0 0.0
    %121 = vmatprep.subr.mxu0 0.0
    %122 = vmatpush2.msra.mxu0 0.0
    %123 = vmatprep.subr.mxu0 0.0
    %124 = vmatpush2.msra.mxu0 0.0
    %125 = vmatprep.subr.mxu0 0.0
    %126 = vmatpush2.msra.mxu0 0.0
    %127 = vmatprep.subr.mxu0 0.0
    %128 = vmatpush2.msra.mxu0 0.0
    %129 = vmatprep.subr.mxu0 0.0
    %130 = vmatpush2.msra.mxu0 0.0
    %131 = vmatprep.mubr.f32.mxu0 0.0
    %132 = vmatmul.mubr.f32.gmra.mxu0 %v65
    %v133 = vpop.f32.mrf.mxu0
    %v134 = vadd.f32 0.0, %v133
    %v135 = vpop.f32.mrf.mxu0
    %136 = vdwg.mxu0
    %137 = vmatprep.subr.mxu0 0.0
    %138 = vmatpush1.msra.mxu0 0.0
    %139 = vmatprep.subr.mxu0 0.0
    %140 = vmatpush1.msra.mxu0 0.0
    %141 = vmatprep.subr.mxu0 0.0
    %142 = vmatpush1.msra.mxu0 0.0
    %143 = vmatprep.subr.mxu0 0.0
    %144 = vmatpush1.msra.mxu0 0.0
    %145 = vmatprep.subr.mxu0 0.0
    %146 = vmatpush1.msra.mxu0 0.0
    %147 = vmatprep.subr.mxu0 0.0
    %148 = vmatpush1.msra.mxu0 0.0
    %149 = vmatprep.subr.mxu0 0.0
    %150 = vmatpush1.msra.mxu0 0.0
    %151 = vmatprep.subr.mxu0 0.0
    %152 = vmatpush1.msra.mxu0 0.0
    %153 = vmatprep.subr.mxu0 0.0
    %154 = vmatpush1.msra.mxu0 0.0
    %155 = vmatprep.subr.mxu0 0.0
    %156 = vmatpush1.msra.mxu0 0.0
    %157 = vmatprep.subr.mxu0 0.0
    %158 = vmatpush1.msra.mxu0 0.0
    %159 = vmatprep.subr.mxu0 0.0
    %160 = vmatpush1.msra.mxu0 0.0
    %161 = vmatprep.subr.mxu0 0.0
    %162 = vmatpush1.msra.mxu0 0.0
    %163 = vmatprep.subr.mxu0 0.0
    %164 = vmatpush1.msra.mxu0 0.0
    %165 = vmatprep.subr.mxu0 0.0
    %166 = vmatpush1.msra.mxu0 %v35
    %167 = vmatprep.subr.mxu0 0.0
    %168 = vmatpush1.msra.mxu0 %v34
    %169 = vmatprep.subr.mxu0 0.0
    %170 = vmatpush2.msra.mxu0 0.0
    %171 = vmatprep.subr.mxu0 0.0
    %172 = vmatpush2.msra.mxu0 0.0
    %173 = vmatprep.subr.mxu0 0.0
    %174 = vmatpush2.msra.mxu0 0.0
    %175 = vmatprep.subr.mxu0 0.0
    %176 = vmatpush2.msra.mxu0 0.0
    %177 = vmatprep.subr.mxu0 0.0
    %178 = vmatpush2.msra.mxu0 0.0
    %179 = vmatprep.subr.mxu0 0.0
    %180 = vmatpush2.msra.mxu0 0.0
    %181 = vmatprep.subr.mxu0 0.0
    %182 = vmatpush2.msra.mxu0 0.0
    %183 = vmatprep.subr.mxu0 0.0
    %184 = vmatpush2.msra.mxu0 0.0
    %185 = vmatprep.subr.mxu0 0.0
    %186 = vmatpush2.msra.mxu0 0.0
    %187 = vmatprep.subr.mxu0 0.0
    %188 = vmatpush2.msra.mxu0 0.0
    %189 = vmatprep.subr.mxu0 0.0
    %190 = vmatpush2.msra.mxu0 0.0
    %191 = vmatprep.subr.mxu0 0.0
    %192 = vmatpush2.msra.mxu0 0.0
    %193 = vmatprep.subr.mxu0 0.0
    %194 = vmatpush2.msra.mxu0 0.0
    %195 = vmatprep.subr.mxu0 0.0
    %196 = vmatpush2.msra.mxu0 0.0
    %197 = vmatprep.subr.mxu0 0.0
    %198 = vmatpush2.msra.mxu0 0.0
    %199 = vmatprep.subr.mxu0 0.0
    %200 = vmatpush2.msra.mxu0 0.0
    %201 = vmatprep.mubr.f32.mxu0 0.0
    %202 = vmatmul.mubr.f32.gmra.mxu0 %v65
    %v203 = vpop.f32.mrf.mxu0
    %v204 = vadd.f32 0.0, %v203
    %v205 = vpop.f32.mrf.mxu0
    %206 = vdwg.mxu0
    %207 = vmatprep.subr.mxu0 0.0
    %208 = vmatpush1.msra.mxu0 0.0
    %209 = vmatprep.subr.mxu0 0.0
    %210 = vmatpush1.msra.mxu0 0.0
    %211 = vmatprep.subr.mxu0 0.0
    %212 = vmatpush1.msra.mxu0 0.0
    %213 = vmatprep.subr.mxu0 0.0
    %214 = vmatpush1.msra.mxu0 0.0
    %215 = vmatprep.subr.mxu0 0.0
    %216 = vmatpush1.msra.mxu0 0.0
    %217 = vmatprep.subr.mxu0 0.0
    %218 = vmatpush1.msra.mxu0 0.0
    %219 = vmatprep.subr.mxu0 0.0
    %220 = vmatpush1.msra.mxu0 0.0
    %221 = vmatprep.subr.mxu0 0.0
    %222 = vmatpush1.msra.mxu0 0.0
    %223 = vmatprep.subr.mxu0 0.0
    %224 = vmatpush1.msra.mxu0 0.0
    %225 = vmatprep.subr.mxu0 0.0
    %226 = vmatpush1.msra.mxu0 0.0
    %227 = vmatprep.subr.mxu0 0.0
    %228 = vmatpush1.msra.mxu0 0.0
    %229 = vmatprep.subr.mxu0 0.0
    %230 = vmatpush1.msra.mxu0 0.0
    %231 = vmatprep.subr.mxu0 0.0
    %232 = vmatpush1.msra.mxu0 0.0
    %233 = vmatprep.subr.mxu0 0.0
    %234 = vmatpush1.msra.mxu0 0.0
    %235 = vmatprep.subr.mxu0 0.0
    %236 = vmatpush1.msra.mxu0 %v43
    %237 = vmatprep.subr.mxu0 0.0
    %238 = vmatpush1.msra.mxu0 %v42
    %239 = vmatprep.subr.mxu0 0.0
    %240 = vmatpush2.msra.mxu0 0.0
    %241 = vmatprep.subr.mxu0 0.0
    %242 = vmatpush2.msra.mxu0 0.0
    %243 = vmatprep.subr.mxu0 0.0
    %244 = vmatpush2.msra.mxu0 0.0
    %245 = vmatprep.subr.mxu0 0.0
    %246 = vmatpush2.msra.mxu0 0.0
    %247 = vmatprep.subr.mxu0 0.0
    %248 = vmatpush2.msra.mxu0 0.0
    %249 = vmatprep.subr.mxu0 0.0
    %250 = vmatpush2.msra.mxu0 0.0
    %251 = vmatprep.subr.mxu0 0.0
    %252 = vmatpush2.msra.mxu0 0.0
    %253 = vmatprep.subr.mxu0 0.0
    %254 = vmatpush2.msra.mxu0 0.0
    %255 = vmatprep.subr.mxu0 0.0
    %256 = vmatpush2.msra.mxu0 0.0
    %257 = vmatprep.subr.mxu0 0.0
    %258 = vmatpush2.msra.mxu0 0.0
    %259 = vmatprep.subr.mxu0 0.0
    %260 = vmatpush2.msra.mxu0 0.0
    %261 = vmatprep.subr.mxu0 0.0
    %262 = vmatpush2.msra.mxu0 0.0
    %263 = vmatprep.subr.mxu0 0.0
    %264 = vmatpush2.msra.mxu0 0.0
    %265 = vmatprep.subr.mxu0 0.0
    %266 = vmatpush2.msra.mxu0 0.0
    %267 = vmatprep.subr.mxu0 0.0
    %268 = vmatpush2.msra.mxu0 0.0
    %269 = vmatprep.subr.mxu0 0.0
    %270 = vmatpush2.msra.mxu0 0.0
    %271 = vmatprep.mubr.f32.mxu0 0.0
    %272 = vmatmul.mubr.f32.gmra.mxu0 %v65
    %v273 = vpop.f32.mrf.mxu0
    %v274 = vadd.f32 0.0, %v273
    %v275 = vpop.f32.mrf.mxu0
    %276 = vdwg.mxu0
    %vm277 = vcmask 64512
    %v279 = vsel %vm277, %v19, 0
    %v282 = vsel %vm277, %v61, 0
    %v285 = vsel %vm277, %v62, 0
    %287 = vmatprep.subr.mxu0 0.0
    %288 = vmatpush1.msra.mxu0 0.0
    %289 = vmatprep.subr.mxu0 0.0
    %290 = vmatpush1.msra.mxu0 0.0
    %291 = vmatprep.subr.mxu0 0.0
    %292 = vmatpush1.msra.mxu0 0.0
    %293 = vmatprep.subr.mxu0 0.0
    %294 = vmatpush1.msra.mxu0 0.0
    %295 = vmatprep.subr.mxu0 0.0
    %296 = vmatpush1.msra.mxu0 0.0
    %297 = vmatprep.subr.mxu0 0.0
    %298 = vmatpush1.msra.mxu0 0.0
    %299 = vmatprep.subr.mxu0 0.0
    %300 = vmatpush1.msra.mxu0 0.0
    %301 = vmatprep.subr.mxu0 0.0
    %302 = vmatpush1.msra.mxu0 0.0
    %303 = vmatprep.subr.mxu0 0.0
    %304 = vmatpush1.msra.mxu0 0.0
    %305 = vmatprep.subr.mxu0 0.0
    %306 = vmatpush1.msra.mxu0 0.0
    %307 = vmatprep.subr.mxu0 0.0
    %308 = vmatpush1.msra.mxu0 0.0
    %309 = vmatprep.subr.mxu0 0.0
    %310 = vmatpush1.msra.mxu0 0.0
    %311 = vmatprep.subr.mxu0 0.0
    %312 = vmatpush1.msra.mxu0 0.0
    %313 = vmatprep.subr.mxu0 0.0
    %314 = vmatpush1.msra.mxu0 0.0
    %315 = vmatprep.subr.mxu0 0.0
    %316 = vmatpush1.msra.mxu0 0.0
    %317 = vmatprep.subr.mxu0 0.0
    %318 = vmatpush1.msra.mxu0 %v204
    %319 = vmatprep.subr.mxu0 0.0
    %320 = vmatpush2.msra.mxu0 0.0
    %321 = vmatprep.subr.mxu0 0.0
    %322 = vmatpush2.msra.mxu0 0.0
    %323 = vmatprep.subr.mxu0 0.0
    %324 = vmatpush2.msra.mxu0 0.0
    %325 = vmatprep.subr.mxu0 0.0
    %326 = vmatpush2.msra.mxu0 0.0
    %327 = vmatprep.subr.mxu0 0.0
    %328 = vmatpush2.msra.mxu0 0.0
    %329 = vmatprep.subr.mxu0 0.0
    %330 = vmatpush2.msra.mxu0 0.0
    %331 = vmatprep.subr.mxu0 0.0
    %332 = vmatpush2.msra.mxu0 0.0
    %333 = vmatprep.subr.mxu0 0.0
    %334 = vmatpush2.msra.mxu0 0.0
    %335 = vmatprep.subr.mxu0 0.0
    %336 = vmatpush2.msra.mxu0 0.0
    %337 = vmatprep.subr.mxu0 0.0
    %338 = vmatpush2.msra.mxu0 0.0
    %339 = vmatprep.subr.mxu0 0.0
    %340 = vmatpush2.msra.mxu0 0.0
    %341 = vmatprep.subr.mxu0 0.0
    %342 = vmatpush2.msra.mxu0 0.0
    %343 = vmatprep.subr.mxu0 0.0
    %344 = vmatpush2.msra.mxu0 0.0
    %345 = vmatprep.subr.mxu0 0.0
    %346 = vmatpush2.msra.mxu0 0.0
    %347 = vmatprep.subr.mxu0 0.0
    %348 = vmatpush2.msra.mxu0 0.0
    %349 = vmatprep.subr.mxu0 0.0
    %350 = vmatpush2.msra.mxu0 0.0
    %351 = vmatprep.mubr.f32.mxu0 0.0
    %352 = vmatmul.mubr.f32.gmra.mxu0 %v279
    %v353 = vpop.f32.mrf.mxu0
    %v354 = vadd.f32 0.0, %v353
    %v355 = vpop.f32.mrf.mxu0
    %356 = vmatprep.mubr.f32.mxu0 0.0
    %357 = vmatmul.mubr.f32.gmra.mxu0 %v282
    %v358 = vpop.f32.mrf.mxu0
    %v359 = vadd.f32 0.0, %v358
    %v360 = vpop.f32.mrf.mxu0
    %361 = vmatprep.mubr.f32.mxu0 0.0
    %362 = vmatmul.mubr.f32.gmra.mxu0 %v285
    %v363 = vpop.f32.mrf.mxu0
    %v364 = vadd.f32 0.0, %v363
    %v365 = vpop.f32.mrf.mxu0
    %366 = vdwg.mxu0
    %vm367 = vcmask 261120
    %v369 = vsel %vm367, %v134, 0
    %371 = vmatprep.subr.mxu0 0.0
    %372 = vmatpush1.msra.mxu0 0.0
    %373 = vmatprep.subr.mxu0 0.0
    %374 = vmatpush1.msra.mxu0 0.0
    %375 = vmatprep.subr.mxu0 0.0
    %376 = vmatpush1.msra.mxu0 0.0
    %377 = vmatprep.subr.mxu0 0.0
    %378 = vmatpush1.msra.mxu0 0.0
    %379 = vmatprep.subr.mxu0 0.0
    %380 = vmatpush1.msra.mxu0 0.0
    %381 = vmatprep.subr.mxu0 0.0
    %382 = vmatpush1.msra.mxu0 0.0
    %383 = vmatprep.subr.mxu0 0.0
    %384 = vmatpush1.msra.mxu0 0.0
    %385 = vmatprep.subr.mxu0 0.0
    %386 = vmatpush1.msra.mxu0 0.0
    %387 = vmatprep.subr.mxu0 0.0
    %388 = vmatpush1.msra.mxu0 0.0
    %389 = vmatprep.subr.mxu0 0.0
    %390 = vmatpush1.msra.mxu0 0.0
    %391 = vmatprep.subr.mxu0 0.0
    %392 = vmatpush1.msra.mxu0 0.0
    %393 = vmatprep.subr.mxu0 0.0
    %394 = vmatpush1.msra.mxu0 0.0
    %395 = vmatprep.subr.mxu0 %v32
    %396 = vmatpush1.msra.mxu0 %v31
    %397 = vmatprep.subr.mxu0 %v29
    %398 = vmatpush1.msra.mxu0 %v28
    %399 = vmatprep.subr.mxu0 %v26
    %400 = vmatpush1.msra.mxu0 %v25
    %401 = vmatprep.subr.mxu0 %v23
    %402 = vmatpush1.msra.mxu0 %v22
    %403 = vmatprep.subr.mxu0 0.0
    %404 = vmatpush2.msra.mxu0 0.0
    %405 = vmatprep.subr.mxu0 0.0
    %406 = vmatpush2.msra.mxu0 0.0
    %407 = vmatprep.subr.mxu0 0.0
    %408 = vmatpush2.msra.mxu0 0.0
    %409 = vmatprep.subr.mxu0 0.0
    %410 = vmatpush2.msra.mxu0 0.0
    %411 = vmatprep.subr.mxu0 0.0
    %412 = vmatpush2.msra.mxu0 0.0
    %413 = vmatprep.subr.mxu0 0.0
    %414 = vmatpush2.msra.mxu0 0.0
    %415 = vmatprep.subr.mxu0 0.0
    %416 = vmatpush2.msra.mxu0 0.0
    %417 = vmatprep.subr.mxu0 0.0
    %418 = vmatpush2.msra.mxu0 0.0
    %419 = vmatprep.subr.mxu0 0.0
    %420 = vmatpush2.msra.mxu0 0.0
    %421 = vmatprep.subr.mxu0 0.0
    %422 = vmatpush2.msra.mxu0 0.0
    %423 = vmatprep.subr.mxu0 0.0
    %424 = vmatpush2.msra.mxu0 0.0
    %425 = vmatprep.subr.mxu0 0.0
    %426 = vmatpush2.msra.mxu0 0.0
    %427 = vmatprep.subr.mxu0 0.0
    %428 = vmatpush2.msra.mxu0 0.0
    %429 = vmatprep.subr.mxu0 0.0
    %430 = vmatpush2.msra.mxu0 0.0
    %431 = vmatprep.subr.mxu0 0.0
    %432 = vmatpush2.msra.mxu0 0.0
    %433 = vmatprep.subr.mxu0 0.0
    %434 = vmatpush2.msra.mxu0 0.0
    %435 = vmatprep.mubr.f32.mxu0 0.0
    %436 = vmatmul.mubr.f32.gmra.mxu0 %v369
    %v437 = vpop.f32.mrf.mxu0
    %v438 = vadd.f32 0.0, %v437
    %v439 = vpop.f32.mrf.mxu0
    %v440 = vadd.f32 0.0, %v439
    %441 = vdwg.mxu0
    %442 = vmatprep.subr.mxu0 0.0
    %443 = vmatpush1.msra.mxu0 0.0
    %444 = vmatprep.subr.mxu0 0.0
    %445 = vmatpush1.msra.mxu0 0.0
    %446 = vmatprep.subr.mxu0 0.0
    %447 = vmatpush1.msra.mxu0 0.0
    %448 = vmatprep.subr.mxu0 0.0
    %449 = vmatpush1.msra.mxu0 0.0
    %450 = vmatprep.subr.mxu0 0.0
    %451 = vmatpush1.msra.mxu0 0.0
    %452 = vmatprep.subr.mxu0 0.0
    %453 = vmatpush1.msra.mxu0 0.0
    %454 = vmatprep.subr.mxu0 0.0
    %455 = vmatpush1.msra.mxu0 0.0
    %456 = vmatprep.subr.mxu0 0.0
    %457 = vmatpush1.msra.mxu0 0.0
    %458 = vmatprep.subr.mxu0 0.0
    %459 = vmatpush1.msra.mxu0 0.0
    %460 = vmatprep.subr.mxu0 0.0
    %461 = vmatpush1.msra.mxu0 0.0
    %462 = vmatprep.subr.mxu0 0.0
    %463 = vmatpush1.msra.mxu0 0.0
    %464 = vmatprep.subr.mxu0 0.0
    %465 = vmatpush1.msra.mxu0 0.0
    %466 = vmatprep.subr.mxu0 0.0
    %467 = vmatpush1.msra.mxu0 %v33
    %468 = vmatprep.subr.mxu0 0.0
    %469 = vmatpush1.msra.mxu0 %v30
    %470 = vmatprep.subr.mxu0 0.0
    %471 = vmatpush1.msra.mxu0 %v27
    %472 = vmatprep.subr.mxu0 0.0
    %473 = vmatpush1.msra.mxu0 %v24
    %474 = vmatprep.subr.mxu0 0.0
    %475 = vmatpush2.msra.mxu0 0.0
    %476 = vmatprep.subr.mxu0 0.0
    %477 = vmatpush2.msra.mxu0 0.0
    %478 = vmatprep.subr.mxu0 0.0
    %479 = vmatpush2.msra.mxu0 0.0
    %480 = vmatprep.subr.mxu0 0.0
    %481 = vmatpush2.msra.mxu0 0.0
    %482 = vmatprep.subr.mxu0 0.0
    %483 = vmatpush2.msra.mxu0 0.0
    %484 = vmatprep.subr.mxu0 0.0
    %485 = vmatpush2.msra.mxu0 0.0
    %486 = vmatprep.subr.mxu0 0.0
    %487 = vmatpush2.msra.mxu0 0.0
    %488 = vmatprep.subr.mxu0 0.0
    %489 = vmatpush2.msra.mxu0 0.0
    %490 = vmatprep.subr.mxu0 0.0
    %491 = vmatpush2.msra.mxu0 0.0
    %492 = vmatprep.subr.mxu0 0.0
    %493 = vmatpush2.msra.mxu0 0.0
    %494 = vmatprep.subr.mxu0 0.0
    %495 = vmatpush2.msra.mxu0 0.0
    %496 = vmatprep.subr.mxu0 0.0
    %497 = vmatpush2.msra.mxu0 0.0
    %498 = vmatprep.subr.mxu0 0.0
    %499 = vmatpush2.msra.mxu0 0.0
    %500 = vmatprep.subr.mxu0 0.0
    %501 = vmatpush2.msra.mxu0 0.0
    %502 = vmatprep.subr.mxu0 0.0
    %503 = vmatpush2.msra.mxu0 0.0
    %504 = vmatprep.subr.mxu0 0.0
    %505 = vmatpush2.msra.mxu0 0.0
    %506 = vmatprep.mubr.f32.mxu0 0.0
    %507 = vmatmul.mubr.f32.gmra.mxu0 %v369
    %v508 = vpop.f32.mrf.mxu0
    %v509 = vadd.f32 0.0, %v508
    %v510 = vpop.f32.mrf.mxu0
    %511 = vdwg.mxu0
    %v512 = vmul.f32 %v354, %v438
    %v513 = vmul.f32 %v359, %v440
    %v514 = vmul.f32 %v364, %v509
    %515 = vmatprep.subr.mxu0 0.0
    %516 = vmatpush1.msra.mxu0 %v59
    %517 = vmatprep.subr.mxu0 0.0
    %518 = vmatpush1.msra.mxu0 %v58
    %519 = vmatprep.subr.mxu0 0.0
    %520 = vmatpush1.msra.mxu0 %v57
    %521 = vmatprep.subr.mxu0 0.0
    %522 = vmatpush1.msra.mxu0 %v56
    %523 = vmatprep.subr.mxu0 0.0
    %524 = vmatpush1.msra.mxu0 %v55
    %525 = vmatprep.subr.mxu0 0.0
    %526 = vmatpush1.msra.mxu0 %v54
    %527 = vmatprep.subr.mxu0 0.0
    %528 = vmatpush1.msra.mxu0 %v53
    %529 = vmatprep.subr.mxu0 0.0
    %530 = vmatpush1.msra.mxu0 %v52
    %531 = vmatprep.subr.mxu0 0.0
    %532 = vmatpush1.msra.mxu0 %v51
    %533 = vmatprep.subr.mxu0 0.0
    %534 = vmatpush1.msra.mxu0 %v50
    %535 = vmatprep.subr.mxu0 0.0
    %536 = vmatpush1.msra.mxu0 %v49
    %537 = vmatprep.subr.mxu0 0.0
    %538 = vmatpush1.msra.mxu0 %v48
    %539 = vmatprep.subr.mxu0 0.0
    %540 = vmatpush1.msra.mxu0 %v47
    %541 = vmatprep.subr.mxu0 0.0
    %542 = vmatpush1.msra.mxu0 %v46
    %543 = vmatprep.subr.mxu0 0.0
    %544 = vmatpush1.msra.mxu0 %v45
    %545 = vmatprep.subr.mxu0 0.0
    %546 = vmatpush1.msra.mxu0 %v44
    %547 = vmatprep.subr.mxu0 0.0
    %548 = vmatpush2.msra.mxu0 0.0
    %549 = vmatprep.subr.mxu0 0.0
    %550 = vmatpush2.msra.mxu0 0.0
    %551 = vmatprep.subr.mxu0 0.0
    %552 = vmatpush2.msra.mxu0 0.0
    %553 = vmatprep.subr.mxu0 0.0
    %554 = vmatpush2.msra.mxu0 0.0
    %555 = vmatprep.subr.mxu0 0.0
    %556 = vmatpush2.msra.mxu0 0.0
    %557 = vmatprep.subr.mxu0 0.0
    %558 = vmatpush2.msra.mxu0 0.0
    %559 = vmatprep.subr.mxu0 0.0
    %560 = vmatpush2.msra.mxu0 0.0
    %561 = vmatprep.subr.mxu0 0.0
    %562 = vmatpush2.msra.mxu0 0.0
    %563 = vmatprep.subr.mxu0 0.0
    %564 = vmatpush2.msra.mxu0 0.0
    %565 = vmatprep.subr.mxu0 0.0
    %566 = vmatpush2.msra.mxu0 0.0
    %567 = vmatprep.subr.mxu0 0.0
    %568 = vmatpush2.msra.mxu0 0.0
    %569 = vmatprep.subr.mxu0 0.0
    %570 = vmatpush2.msra.mxu0 0.0
    %571 = vmatprep.subr.mxu0 0.0
    %572 = vmatpush2.msra.mxu0 0.0
    %573 = vmatprep.subr.mxu0 0.0
    %574 = vmatpush2.msra.mxu0 0.0
    %575 = vmatprep.subr.mxu0 0.0
    %576 = vmatpush2.msra.mxu0 0.0
    %577 = vmatprep.subr.mxu0 0.0
    %578 = vmatpush2.msra.mxu0 0.0
    %579 = vmatprep.mubr.f32.mxu0 0.0
    %580 = vmatmul.mubr.f32.gmra.mxu0 %v512
    %v581 = vpop.f32.mrf.mxu0
    %v582 = vadd.f32 0.0, %v581
    %v583 = vpop.f32.mrf.mxu0
    %584 = vmatprep.mubr.f32.mxu0 0.0
    %585 = vmatmul.mubr.f32.gmra.mxu0 %v513
    %v586 = vpop.f32.mrf.mxu0
    %v587 = vadd.f32 0.0, %v586
    %v588 = vpop.f32.mrf.mxu0
    %589 = vmatprep.mubr.f32.mxu0 0.0
    %590 = vmatmul.mubr.f32.gmra.mxu0 %v514
    %v591 = vpop.f32.mrf.mxu0
    %v592 = vadd.f32 0.0, %v591
    %v593 = vpop.f32.mrf.mxu0
    %594 = vdwg.mxu0
    %595 = vmatprep.subr.mxu0 0.0
    %596 = vmatpush1.msra.mxu0 0.0
    %597 = vmatprep.subr.mxu0 0.0
    %598 = vmatpush1.msra.mxu0 0.0
    %599 = vmatprep.subr.mxu0 0.0
    %600 = vmatpush1.msra.mxu0 0.0
    %601 = vmatprep.subr.mxu0 0.0
    %602 = vmatpush1.msra.mxu0 0.0
    %603 = vmatprep.subr.mxu0 0.0
    %604 = vmatpush1.msra.mxu0 0.0
    %605 = vmatprep.subr.mxu0 0.0
    %606 = vmatpush1.msra.mxu0 0.0
    %607 = vmatprep.subr.mxu0 0.0
    %608 = vmatpush1.msra.mxu0 0.0
    %609 = vmatprep.subr.mxu0 0.0
    %610 = vmatpush1.msra.mxu0 0.0
    %611 = vmatprep.subr.mxu0 0.0
    %612 = vmatpush1.msra.mxu0 0.0
    %613 = vmatprep.subr.mxu0 0.0
    %614 = vmatpush1.msra.mxu0 0.0
    %615 = vmatprep.subr.mxu0 0.0
    %616 = vmatpush1.msra.mxu0 0.0
    %617 = vmatprep.subr.mxu0 0.0
    %618 = vmatpush1.msra.mxu0 0.0
    %619 = vmatprep.subr.mxu0 0.0
    %620 = vmatpush1.msra.mxu0 %v41
    %621 = vmatprep.subr.mxu0 0.0
    %622 = vmatpush1.msra.mxu0 %v40
    %623 = vmatprep.subr.mxu0 0.0
    %624 = vmatpush1.msra.mxu0 %v39
    %625 = vmatprep.subr.mxu0 0.0
    %626 = vmatpush1.msra.mxu0 %v38
    %627 = vmatprep.subr.mxu0 0.0
    %628 = vmatpush2.msra.mxu0 0.0
    %629 = vmatprep.subr.mxu0 0.0
    %630 = vmatpush2.msra.mxu0 0.0
    %631 = vmatprep.subr.mxu0 0.0
    %632 = vmatpush2.msra.mxu0 0.0
    %633 = vmatprep.subr.mxu0 0.0
    %634 = vmatpush2.msra.mxu0 0.0
    %635 = vmatprep.subr.mxu0 0.0
    %636 = vmatpush2.msra.mxu0 0.0
    %637 = vmatprep.subr.mxu0 0.0
    %638 = vmatpush2.msra.mxu0 0.0
    %639 = vmatprep.subr.mxu0 0.0
    %640 = vmatpush2.msra.mxu0 0.0
    %641 = vmatprep.subr.mxu0 0.0
    %642 = vmatpush2.msra.mxu0 0.0
    %643 = vmatprep.subr.mxu0 0.0
    %644 = vmatpush2.msra.mxu0 0.0
    %645 = vmatprep.subr.mxu0 0.0
    %646 = vmatpush2.msra.mxu0 0.0
    %647 = vmatprep.subr.mxu0 0.0
    %648 = vmatpush2.msra.mxu0 0.0
    %649 = vmatprep.subr.mxu0 0.0
    %650 = vmatpush2.msra.mxu0 0.0
    %651 = vmatprep.subr.mxu0 0.0
    %652 = vmatpush2.msra.mxu0 0.0
    %653 = vmatprep.subr.mxu0 0.0
    %654 = vmatpush2.msra.mxu0 0.0
    %655 = vmatprep.subr.mxu0 0.0
    %656 = vmatpush2.msra.mxu0 0.0
    %657 = vmatprep.subr.mxu0 0.0
    %658 = vmatpush2.msra.mxu0 0.0
    %659 = vmatprep.mubr.f32.mxu0 0.0
    %660 = vmatmul.mubr.f32.gmra.mxu0 %v369
    %v661 = vpop.f32.mrf.mxu0
    %v662 = vadd.f32 0.0, %v661
    %v663 = vpop.f32.mrf.mxu0
    %664 = vdwg.mxu0
    %v666 = vsel %vm277, %v20, 0
    %v669 = vsel %vm277, %v21, 0
    %671 = vmatprep.subr.mxu0 0.0
    %672 = vmatpush1.msra.mxu0 0.0
    %673 = vmatprep.subr.mxu0 0.0
    %674 = vmatpush1.msra.mxu0 0.0
    %675 = vmatprep.subr.mxu0 0.0
    %676 = vmatpush1.msra.mxu0 0.0
    %677 = vmatprep.subr.mxu0 0.0
    %678 = vmatpush1.msra.mxu0 0.0
    %679 = vmatprep.subr.mxu0 0.0
    %680 = vmatpush1.msra.mxu0 0.0
    %681 = vmatprep.subr.mxu0 0.0
    %682 = vmatpush1.msra.mxu0 0.0
    %683 = vmatprep.subr.mxu0 0.0
    %684 = vmatpush1.msra.mxu0 0.0
    %685 = vmatprep.subr.mxu0 0.0
    %686 = vmatpush1.msra.mxu0 0.0
    %687 = vmatprep.subr.mxu0 0.0
    %688 = vmatpush1.msra.mxu0 0.0
    %689 = vmatprep.subr.mxu0 0.0
    %690 = vmatpush1.msra.mxu0 0.0
    %691 = vmatprep.subr.mxu0 0.0
    %692 = vmatpush1.msra.mxu0 0.0
    %693 = vmatprep.subr.mxu0 0.0
    %694 = vmatpush1.msra.mxu0 0.0
    %695 = vmatprep.subr.mxu0 0.0
    %696 = vmatpush1.msra.mxu0 0.0
    %697 = vmatprep.subr.mxu0 0.0
    %698 = vmatpush1.msra.mxu0 0.0
    %699 = vmatprep.subr.mxu0 0.0
    %700 = vmatpush1.msra.mxu0 0.0
    %701 = vmatprep.subr.mxu0 0.0
    %702 = vmatpush1.msra.mxu0 %v274
    %703 = vmatprep.subr.mxu0 0.0
    %704 = vmatpush2.msra.mxu0 0.0
    %705 = vmatprep.subr.mxu0 0.0
    %706 = vmatpush2.msra.mxu0 0.0
    %707 = vmatprep.subr.mxu0 0.0
    %708 = vmatpush2.msra.mxu0 0.0
    %709 = vmatprep.subr.mxu0 0.0
    %710 = vmatpush2.msra.mxu0 0.0
    %711 = vmatprep.subr.mxu0 0.0
    %712 = vmatpush2.msra.mxu0 0.0
    %713 = vmatprep.subr.mxu0 0.0
    %714 = vmatpush2.msra.mxu0 0.0
    %715 = vmatprep.subr.mxu0 0.0
    %716 = vmatpush2.msra.mxu0 0.0
    %717 = vmatprep.subr.mxu0 0.0
    %718 = vmatpush2.msra.mxu0 0.0
    %719 = vmatprep.subr.mxu0 0.0
    %720 = vmatpush2.msra.mxu0 0.0
    %721 = vmatprep.subr.mxu0 0.0
    %722 = vmatpush2.msra.mxu0 0.0
    %723 = vmatprep.subr.mxu0 0.0
    %724 = vmatpush2.msra.mxu0 0.0
    %725 = vmatprep.subr.mxu0 0.0
    %726 = vmatpush2.msra.mxu0 0.0
    %727 = vmatprep.subr.mxu0 0.0
    %728 = vmatpush2.msra.mxu0 0.0
    %729 = vmatprep.subr.mxu0 0.0
    %730 = vmatpush2.msra.mxu0 0.0
    %731 = vmatprep.subr.mxu0 0.0
    %732 = vmatpush2.msra.mxu0 0.0
    %733 = vmatprep.subr.mxu0 0.0
    %734 = vmatpush2.msra.mxu0 0.0
    %735 = vmatprep.mubr.f32.mxu0 0.0
    %736 = vmatmul.mubr.f32.gmra.mxu0 %v279
    %v737 = vpop.f32.mrf.mxu0
    %v738 = vadd.f32 0.0, %v737
    %v739 = vpop.f32.mrf.mxu0
    %740 = vmatprep.mubr.f32.mxu0 0.0
    %741 = vmatmul.mubr.f32.gmra.mxu0 %v666
    %v742 = vpop.f32.mrf.mxu0
    %v743 = vadd.f32 0.0, %v742
    %v744 = vpop.f32.mrf.mxu0
    %745 = vmatprep.mubr.f32.mxu0 0.0
    %746 = vmatmul.mubr.f32.gmra.mxu0 %v669
    %v747 = vpop.f32.mrf.mxu0
    %v748 = vadd.f32 0.0, %v747
    %v749 = vpop.f32.mrf.mxu0
    %750 = vdwg.mxu0
    %v751 = vadd.f32 %v582, %v738
    %v752 = vadd.f32 %v751, %v662
    %v753 = vadd.f32 %v752, %v60
    %v754 = vmax.f32 %v753, 0.0
    %755 = vst.msk [vmem:[#allocation2] sm:$0xff] %vm367, %v754
    %v756 = vadd.f32 %v587, %v743
    %v757 = vadd.f32 %v756, %v662
    %v758 = vadd.f32 %v757, %v60
    %v759 = vmax.f32 %v758, 0.0
    %s760 = scalar_lea.vmem [#allocation2], 8
    %761 = vst.msk [vmem:[%s760] sm:$0xff] %vm367, %v759
    %v762 = vadd.f32 %v592, %v748
    %v763 = vadd.f32 %v762, %v662
    %v764 = vadd.f32 %v763, %v60
    %v765 = vmax.f32 %v764, 0.0
    %s766 = scalar_lea.vmem [#allocation2], 16
    %767 = vst.msk [vmem:[%s766] sm:$0xff] %vm367, %v765
    // Predicated region
    $region18: #{tpu_custom_call.1} parent=1 // pred_check
      _
    $region19: #{tpu_custom_call.1} parent=1 // pred_check_branch
      %769 = sbr.rel (0) target = $region21
    $region20: #{tpu_custom_call.1} parent=1 // pred_region
      %s771 = ssub.s32 384, 384
      %772 = vsyncadd [#allocation3], %s771
      %s773 = sshll.u32 [#allocation2], 4
      %s774 = int_to_ptr.vmem [resolvable:$true] %s773
      %779 = dma.vmem_to_hbm [thread:$0]  %s774, 384, %s4, [#allocation3], 128, 128, 8
    $region21: #{tpu_custom_call.1} parent=1 // pred_fallthru
      _
    // Predicated region
    $region22: #{tpu_custom_call.1} parent=1 // pred_check
      _
    $region23: #{tpu_custom_call.1} parent=1 // pred_check_branch
      %781 = sbr.rel (0) target = $region25
    $region24: #{tpu_custom_call.1} parent=1 // pred_region
      %782 = dma.done [#allocation3], 384
    $region25: #{tpu_custom_call.1} parent=1 // pred_fallthru
      _
    %783 = vsyncpa [#allocation3], 1

</llo_original>
